<compile_context>
chip_gen: v7x
topology: tpu7x:2x2x1
jax: 0.10.0
libtpu: 0.0.40
codegen_flags: <defaults>
</compile_context>

<pallas_src>
import jax
import jax.numpy as jnp
from jax.experimental import pallas as pl
from jax.experimental.pallas import tpu as pltpu


def _round_up(x, m):
    return ((x + m - 1) // m) * m


def _index_add_kernel(counts_ref, bmap_ref, idx_ref, a_ref, b_ref, o_ref,
                      *scratch):
    # counts_ref: (grid_n*grid_m,) int32 in SMEM  (hits per (n, m) tile)
    # bmap_ref  : (grid_n*grid_m,) int32 in SMEM  (only used by B's index_map)
    # idx_ref   : (1, TM) int32   (padded entries are -1 -> match nothing)
    # a_ref     : (TN, TD)        (same block across the m axis)
    # b_ref     : (TM, TD)
    # o_ref     : (TN, TD)        (same block across the m axis)
    # scratch   : optionally one (TN, TD) f32 VMEM accumulator (non-f32 out)
    del bmap_ref
    n = pl.program_id(0)
    m = pl.program_id(2)
    gm = pl.num_programs(2)
    tn = a_ref.shape[0]
    tm = b_ref.shape[0]

    use_acc = len(scratch) > 0          # static Python bool
    acc_ref = scratch[0] if use_acc else o_ref

    @pl.when(m == 0)
    def _init():
        # Fold the "+ A" into the accumulator init.
        acc_ref[...] = a_ref[...].astype(acc_ref.dtype)

    @pl.when(counts_ref[n * gm + m] > 0)
    def _compute():
        # One-hot scatter tile; offset lives on the (1, TM) index vector.
        rows = jax.lax.broadcasted_iota(jnp.int32, (tn, tm), 0)
        idx_rel = idx_ref[...] - n * tn                    # (1, tm)
        # bf16 one-hot only when B is bf16 (exact 0/1, full-rate bf16 MXU);
        # keep f32 when B is f32 so there is no precision loss.
        if jnp.dtype(b_ref.dtype) == jnp.dtype(jnp.bfloat16):
            s_dtype = jnp.bfloat16
        else:
            s_dtype = jnp.float32
        scatter = (rows == idx_rel).astype(s_dtype)        # (tn, tm)
        acc_ref[...] += jnp.dot(scatter, b_ref[...],
                                preferred_element_type=jnp.float32)

    if use_acc:
        @pl.when(m == pl.num_programs(2) - 1)
        def _store():
            o_ref[...] = acc_ref[...].astype(o_ref.dtype)


def index_add_pallas(index, A, B, *,
                     tn_max=512, tm_max=1024, td_max=512,
                     vmem_budget_bytes=32 * 1024 * 1024):
    """Equivalent of Net()(index, A, B) == A.index_add(0, index, B)."""
    N, D = A.shape
    M, Db = B.shape
    assert D == Db and index.shape[0] == M

    a_bytes = jnp.dtype(A.dtype).itemsize
    b_bytes = jnp.dtype(B.dtype).itemsize
    o_bytes = a_bytes
    f32_out = jnp.dtype(A.dtype) == jnp.dtype(jnp.float32)

    # Native sublane tile for the A/out dtype (f32: 8, bf16: 16, int8: 32).
    sub = max(8, 32 // a_bytes)

    # Initial tile sizes (lane-dense feature axis, dtype-aligned row axis).
    TN = min(tn_max, _round_up(N, sub))
    TM = min(tm_max, _round_up(M, 128))
    D128 = _round_up(max(D, 1), 128)
    TD = min(_round_up(td_max, 128), D128)

    def vmem_bytes(tn, tm, td):
        total = 2 * tn * td * a_bytes       # A tiles (double-buffered)
        total += 2 * tm * td * b_bytes      # B tiles
        total += 2 * tn * td * o_bytes      # out tiles
        total += 2 * tm * 4                 # index tiles
        total += tn * tm * 4                # one-hot temp (conservative f32)
        if not f32_out:
            total += tn * td * 4            # f32 accumulator scratch
        return total

    # Shrink tiles until they fit the VMEM budget (safe for v7x's 64 MiB).
    for _ in range(64):
        if vmem_bytes(TN, TM, TD) <= vmem_budget_bytes:
            break
        if TM > 128:
            TM = max(128, _round_up(TM // 2, 128))
        elif TD > 128:
            TD = max(128, _round_up(TD // 2, 128))
        elif TN > sub:
            TN = max(sub, _round_up(TN // 2, sub))
        else:
            break

    Np = _round_up(N, TN)
    Mp = _round_up(M, TM)
    Dp = _round_up(D128, TD)
    grid_n, grid_d, grid_m = Np // TN, Dp // TD, Mp // TM

    # ---- cheap O(M) metadata for tile skipping (scalar prefetch, SMEM) ----
    idx_i32 = index.astype(jnp.int32)
    valid = ((idx_i32 >= 0) & (idx_i32 < N)).astype(jnp.int32)
    n_tid = jnp.clip(idx_i32, 0, max(N - 1, 0)) // TN
    m_tid = jnp.arange(M, dtype=jnp.int32) // TM
    counts = jnp.zeros((grid_n, grid_m), jnp.int32).at[n_tid, m_tid].add(valid)
    # B-block map: on a miss re-use the most recent hit's block index so the
    # pipeline does not issue a new (useless) B DMA for that grid step.
    mm = jnp.broadcast_to(jnp.arange(grid_m, dtype=jnp.int32)[None, :],
                          (grid_n, grid_m))
    last_hit = jax.lax.cummax(jnp.where(counts > 0, mm, -1), axis=1)
    bmap = jnp.where(last_hit >= 0, last_hit, 0).astype(jnp.int32)
    counts_flat = counts.reshape(-1)     # 1-D in SMEM (avoids 2-D SMEM padding)
    bmap_flat = bmap.reshape(-1)

    # ---- inputs: only pad when shapes are not already tile-aligned ----
    if Np == N and Dp == D:
        A_in = A
    else:
        A_in = jnp.zeros((Np, Dp), dtype=A.dtype).at[:N, :D].set(A)
    if Mp == M and Dp == D:
        B_in = B
    else:
        B_in = jnp.zeros((Mp, Dp), dtype=B.dtype).at[:M, :D].set(B)
    if Mp == M:
        idx_in = idx_i32.reshape(1, M)
    else:
        idx_in = jnp.full((1, Mp), -1, dtype=jnp.int32).at[0, :M].set(idx_i32)

    scratch_shapes = [] if f32_out else [pltpu.VMEM((TN, TD), jnp.float32)]

    out = pl.pallas_call(
        _index_add_kernel,
        out_shape=jax.ShapeDtypeStruct((Np, Dp), A.dtype),
        grid_spec=pltpu.PrefetchScalarGridSpec(
            num_scalar_prefetch=2,
            grid=(grid_n, grid_d, grid_m),
            in_specs=[
                # index tile
                pl.BlockSpec((1, TM), lambda n, d, m, cnt, bm: (0, m)),
                # A tile (resident across the m axis)
                pl.BlockSpec((TN, TD), lambda n, d, m, cnt, bm: (n, d)),
                # B tile; misses repeat the previous hit's block (no new DMA)
                pl.BlockSpec((TM, TD),
                             lambda n, d, m, cnt, bm: (bm[n * grid_m + m], d)),
            ],
            out_specs=pl.BlockSpec((TN, TD), lambda n, d, m, cnt, bm: (n, d)),
            scratch_shapes=scratch_shapes,
        ),
        compiler_params=pltpu.CompilerParams(
            dimension_semantics=("parallel", "parallel", "arbitrary"),
            vmem_limit_bytes=48 * 1024 * 1024,
        ),
    )(counts_flat, bmap_flat, idx_in, A_in, B_in)

    if Np == N and Dp == D:
        return out
    return out[:N, :D]


if __name__ == "__main__":
    keys = jax.random.split(jax.random.PRNGKey(0), 6)

    # --- Test 1: the exact example from the original module (A: (5,3) ones,
    #     B: explicit values, duplicate indices). ---
    A = jnp.ones((5, 3), dtype=jnp.float32)
    B = jnp.array([[1, 2, 3], [4, 5, 6], [7, 8, 9],
                   [100, 110, 120], [1000, 1100, 1200],
                   [10000, 11000, 12000]], dtype=jnp.float32)
    index = jnp.array([0, 4, 2, 2, 4, 4], dtype=jnp.int32)

    out = jax.block_until_ready(index_add_pallas(index, A, B))
    ref = A.at[index].add(B)
    assert jnp.allclose(out, ref, atol=1e-5, rtol=1e-5), "mismatch (test 1)"

    # --- Test 2: non-aligned shapes, small tiles so the (n, d, m) grid, the
    #     ragged padding, and the tile-skip path are all exercised
    #     (indices only touch rows < 12, so n-tiles 1 and 2 are all-miss). ---
    N2, D2, M2 = 37, 200, 300
    A2 = jax.random.normal(keys[0], (N2, D2), dtype=jnp.float32)
    B2 = jax.random.normal(keys[1], (M2, D2), dtype=jnp.float32)
    index2 = jax.random.randint(keys[2], (M2,), 0, 12, dtype=jnp.int32)

    out2 = jax.block_until_ready(
        index_add_pallas(index2, A2, B2, tn_max=16, tm_max=128, td_max=128))
    ref2 = A2.at[index2].add(B2)
    assert jnp.allclose(out2, ref2, atol=1e-4, rtol=1e-4), "mismatch (test 2)"

    # --- Test 3: bf16 inputs/outputs (f32 accumulator scratch path). ---
    N3, D3, M3 = 10, 64, 40
    A3 = jax.random.normal(keys[3], (N3, D3), dtype=jnp.float32).astype(jnp.bfloat16)
    B3 = jax.random.normal(keys[4], (M3, D3), dtype=jnp.float32).astype(jnp.bfloat16)
    index3 = jax.random.randint(keys[5], (M3,), 0, N3, dtype=jnp.int32)

    out3 = jax.block_until_ready(index_add_pallas(index3, A3, B3))
    ref3 = (A3.astype(jnp.float32).at[index3]
            .add(B3.astype(jnp.float32))).astype(jnp.bfloat16)
    assert jnp.allclose(out3.astype(jnp.float32), ref3.astype(jnp.float32),
                        atol=5e-2, rtol=5e-2), "mismatch (test 3)"

    print("KERNEL_OK")
</pallas_src>

<mosaic_0001>
module attributes {stable_mosaic.version = 11 : i64} {
  func.func @_index_add_kernel(%arg0: i32, %arg1: i32, %arg2: i32, %arg3: memref<1xi32, #tpu.memory_space<smem>>, %arg4: memref<1xi32, #tpu.memory_space<smem>>, %arg5: memref<1x128xi32, #tpu.memory_space<vmem>>, %arg6: memref<8x128xf32, #tpu.memory_space<vmem>>, %arg7: memref<128x128xf32, #tpu.memory_space<vmem>>, %arg8: memref<8x128xf32, #tpu.memory_space<vmem>>) attributes {dimension_semantics = [#tpu.dimension_semantics<parallel>, #tpu.dimension_semantics<parallel>, #tpu.dimension_semantics<arbitrary>], iteration_bounds = array<i64: 1, 1, 1>, scalar_prefetch = 2 : i64, scratch_operands = 0 : i64, tpu.core_type = #tpu.core_type<tc>, window_params = [{transform_indices = @transform_0, window_bounds = array<i64: 1, 128>}, {transform_indices = @transform_1, window_bounds = array<i64: 8, 128>}, {transform_indices = @transform_2, window_bounds = array<i64: 128, 128>}, {transform_indices = @transform_3, window_bounds = array<i64: 8, 128>}]} {
    %c0_i32 = arith.constant 0 : i32
    %0 = arith.cmpi eq, %arg2, %c0_i32 : i32
    %1 = arith.extui %0 : i1 to i32
    %c0_i32_0 = arith.constant 0 : i32
    %2 = arith.cmpi ne, %1, %c0_i32_0 : i32
    scf.if %2 {
      %c0 = arith.constant 0 : index
      %c0_3 = arith.constant 0 : index
      %10 = vector.load %arg6[%c0, %c0_3] : memref<8x128xf32, #tpu.memory_space<vmem>>, vector<8x128xf32>
      %c0_4 = arith.constant 0 : index
      %c0_5 = arith.constant 0 : index
      %11 = vector.load %arg8[%c0_4, %c0_5] : memref<8x128xf32, #tpu.memory_space<vmem>>, vector<8x128xf32>
      tpu.vector_store %arg8[%c0_4, %c0_5], %10 {strides = array<i32>} : memref<8x128xf32, #tpu.memory_space<vmem>>, vector<8x128xf32>,
    } else {
    }
    %c1_i32 = arith.constant 1 : i32
    %3 = arith.muli %arg0, %c1_i32 : i32
    %4 = arith.addi %3, %arg2 : i32
    %5 = arith.index_cast %4 : i32 to index
    %6 = memref.load %arg3[%5] : memref<1xi32, #tpu.memory_space<smem>>
    %c0_i32_1 = arith.constant 0 : i32
    %7 = arith.cmpi sgt, %6, %c0_i32_1 : i32
    %8 = arith.extui %7 : i1 to i32
    %c0_i32_2 = arith.constant 0 : i32
    %9 = arith.cmpi ne, %8, %c0_i32_2 : i32
    scf.if %9 {
      %10 = tpu.iota {dimensions = array<i32: 0>} : vector<8x128xi32>
      %c0 = arith.constant 0 : index
      %c0_3 = arith.constant 0 : index
      %11 = vector.load %arg5[%c0, %c0_3] : memref<1x128xi32, #tpu.memory_space<vmem>>, vector<1x128xi32>
      %c8_i32 = arith.constant 8 : i32
      %12 = arith.muli %arg0, %c8_i32 : i32
      %13 = vector.broadcast %12 : i32 to vector<1x128xi32>
      %14 = arith.subi %11, %13 : vector<1x128xi32>
      %15 = vector.broadcast %14 : vector<1x128xi32> to vector<8x128xi32>
      %16 = arith.cmpi eq, %10, %15 : vector<8x128xi32>
      %17 = arith.extui %16 : vector<8x128xi1> to vector<8x128xi32>
      %18 = arith.sitofp %17 : vector<8x128xi32> to vector<8x128xf32>
      %c0_4 = arith.constant 0 : index
      %c0_5 = arith.constant 0 : index
      %19 = vector.load %arg8[%c0_4, %c0_5] : memref<8x128xf32, #tpu.memory_space<vmem>>, vector<8x128xf32>
      %c0_6 = arith.constant 0 : index
      %c0_7 = arith.constant 0 : index
      %20 = vector.load %arg7[%c0_6, %c0_7] : memref<128x128xf32, #tpu.memory_space<vmem>>, vector<128x128xf32>
      %cst = arith.constant dense<0.000000e+00> : vector<8x128xf32>
      %21 = tpu.matmul %18, %20, %cst {dimension_numbers = #tpu.dot_dimension_numbers<[1], [0], [0], [1], [0, 0, 1, 1], [], []>} : vector<8x128xf32>, vector<128x128xf32>, vector<8x128xf32> -> vector<8x128xf32>
      %22 = arith.addf %19, %21 : vector<8x128xf32>
      %c0_8 = arith.constant 0 : index
      %c0_9 = arith.constant 0 : index
      %23 = vector.load %arg8[%c0_8, %c0_9] : memref<8x128xf32, #tpu.memory_space<vmem>>, vector<8x128xf32>
      tpu.vector_store %arg8[%c0_8, %c0_9], %22 {strides = array<i32>} : memref<8x128xf32, #tpu.memory_space<vmem>>, vector<8x128xf32>,
    } else {
    }
    return
  }
  func.func @transform_0(%arg0: i32, %arg1: i32, %arg2: i32, %arg3: memref<1xi32, #tpu.memory_space<smem>>, %arg4: memref<1xi32, #tpu.memory_space<smem>>) -> (i32, i32) {
    %c0_i32 = arith.constant 0 : i32
    %c0_i32_0 = arith.constant 0 : i32
    return %c0_i32, %arg2 : i32, i32
  }
  func.func @transform_1(%arg0: i32, %arg1: i32, %arg2: i32, %arg3: memref<1xi32, #tpu.memory_space<smem>>, %arg4: memref<1xi32, #tpu.memory_space<smem>>) -> (i32, i32) {
    %c0_i32 = arith.constant 0 : i32
    return %arg0, %arg1 : i32, i32
  }
  func.func @transform_2(%arg0: i32, %arg1: i32, %arg2: i32, %arg3: memref<1xi32, #tpu.memory_space<smem>>, %arg4: memref<1xi32, #tpu.memory_space<smem>>) -> (i32, i32) {
    %c1_i32 = arith.constant 1 : i32
    %0 = arith.muli %arg0, %c1_i32 : i32
    %1 = arith.addi %0, %arg2 : i32
    %2 = arith.index_cast %1 : i32 to index
    %3 = memref.load %arg4[%2] : memref<1xi32, #tpu.memory_space<smem>>
    %c0_i32 = arith.constant 0 : i32
    return %3, %arg1 : i32, i32
  }
  func.func @transform_3(%arg0: i32, %arg1: i32, %arg2: i32, %arg3: memref<1xi32, #tpu.memory_space<smem>>, %arg4: memref<1xi32, #tpu.memory_space<smem>>) -> (i32, i32) {
    %c0_i32 = arith.constant 0 : i32
    return %arg0, %arg1 : i32, i32
  }
}

</mosaic_0001>

<llo_original>
// kernel: tpu_custom_call.1
$region0: #{tpu_custom_call.1}
  #allocation0 [shape = 'u32[]', space=smem, size = 0x4, offset = 0x4, fixed_abs, tag = 'smem constant byte address 0x4 - core index']
  #allocation1 [shape = 'u32[144,128]{1,0:T(1,128)}', space=vmem, size = 0x12000, scoped, tag = 'internal scratch']
  #allocation2 [shape = 's32[1]{0}', space=sflag, size = 0x4, scoped, tag = 'scoped memory for tpu_custom_call.1']
  #allocation3 [shape = 's32[1]{0:T(128)S(6)}', space=smem, size = 0x200, scoped, tag = 'prefetched SMEM operand 0']
  #allocation4 [shape = 's32[1]{0:T(128)S(6)}', space=smem, size = 0x200, scoped, tag = 'prefetched SMEM operand 1']
  %s0 = inlined_call_operand.<no memory space> [shape: s32[1], index: 0, kind: input, shape index: {}]
  %s1 = inlined_call_operand.<no memory space> [shape: s32[1], index: 1, kind: input, shape index: {}]
  %s2 = inlined_call_operand.vmem [shape: s32[1,128], index: 2, kind: input, shape index: {}]
  %s3 = inlined_call_operand.vmem [shape: f32[8,128], index: 3, kind: input, shape index: {}]
  %s4 = inlined_call_operand.hbm [shape: f32[128,128], index: 4, kind: input, shape index: {}]
  %s5 = inlined_call_operand.hbm [shape: f32[8,128], index: 5, kind: output, shape index: {}]
  %s6 = sld [smem:[#allocation0]]
  $region34: #{tpu_custom_call.1} parent=0
    _
  %s8 = ssub.s32 1, %s6
  %s9 = scalar_select 0, %s8, %s6
  %10 = sst [smem:[#allocation3]] %s0
  %11 = sst [smem:[#allocation4]] %s1
  $region1: #{tpu_custom_call.1} parent=0
    #allocation5 [shape = 'u8[65536]{0}', space=vmem, size = 0x10000, scoped, tag = 'input window, operand 4, single buffered']
    #allocation6 [shape = 's32[1]{0}', space=sflag, size = 0x4, scoped, tag = 'scoped memory for tpu_custom_call.1']
    #allocation7 [shape = 's32[1]{0}', space=sflag, size = 0x4, scoped, tag = 'scoped memory for tpu_custom_call.1']
    #allocation8 [shape = 'u8[4096]{0}', space=vmem, size = 0x1000, scoped, tag = 'output window, operand 0, single buffered']
    %12 = vsyncpa [#allocation6], 0
    %13 = vsyncpa [#allocation7], 0
    // Predicated region
    $region2: #{tpu_custom_call.1} parent=1 // pred_check
      _
    $region3: #{tpu_custom_call.1} parent=1 // pred_check_branch
      %15 = sbr.rel (0) target = $region5
    $region4: #{tpu_custom_call.1} parent=1 // pred_region
      _
    $region5: #{tpu_custom_call.1} parent=1 // pred_fallthru
      _
    // Predicated region
    $region6: #{tpu_custom_call.1} parent=1 // pred_check
      _
    $region7: #{tpu_custom_call.1} parent=1 // pred_check_branch
      %17 = sbr.rel (0) target = $region9
    $region8: #{tpu_custom_call.1} parent=1 // pred_region
      _
    $region9: #{tpu_custom_call.1} parent=1 // pred_fallthru
      _
    // Predicated region
    $region10: #{tpu_custom_call.1} parent=1 // pred_check
      _
    $region11: #{tpu_custom_call.1} parent=1 // pred_check_branch
      %19 = sbr.rel (0) target = $region13
    $region12: #{tpu_custom_call.1} parent=1 // pred_region
      %s20 = sadd.s32 0, 0
      %s21 = sld [smem:[#allocation4 + %s20]]
      %s22 = smul.u32 16, %s21
      %s24 = ssub.s32 2048, 2048
      %25 = vsyncadd [#allocation6], %s24
      %s26 = smul.addr %s22, 128
      %s27 = scalar_lea.hbm %s4, %s26
      %s28 = sshll.u32 [#allocation5], 4
      %s29 = int_to_ptr.vmem [resolvable:$true] %s28
      %34 = dma.hbm_to_vmem [thread:$0]  %s27, 2048, %s29, [#allocation6], 128, 128, 8
    $region13: #{tpu_custom_call.1} parent=1 // pred_fallthru
      _
    // Predicated region
    $region14: #{tpu_custom_call.1} parent=1 // pred_check
      _
    $region15: #{tpu_custom_call.1} parent=1 // pred_check_branch
      %36 = sbr.rel (0) target = $region17
    $region16: #{tpu_custom_call.1} parent=1 // pred_region
      %37 = dma.done [#allocation6], 2048
    $region17: #{tpu_custom_call.1} parent=1 // pred_fallthru
      _
    %s38 = sadd.s32 0, 0
    %s39 = sld [smem:[#allocation4 + %s38]]
    %s40 = smul.u32 16, %s39
    %p41 = scmp.eq.s32.totalorder 0, 0
    // Predicated region
    $region18: #{tpu_custom_call.1} parent=1 // pred_check
      %p42 = pneg %p41
    $region19: #{tpu_custom_call.1} parent=1 // pred_check_branch
      %44 = sbr.rel (%p42) target = $region21
    $region20: #{tpu_custom_call.1} parent=1 // pred_region
      %v45 = vld [vmem:[%s3] sm:$0xff]
      %46 = vst [vmem:[#allocation8] sm:$0xff] %v45
    $region21: #{tpu_custom_call.1} parent=1 // pred_fallthru
      _
    %s47 = sadd.s32 0, 0
    %s48 = sld [smem:[#allocation3 + %s47]]
    %p49 = scmp.gt.s32.totalorder %s48, 0
    // Predicated region
    $region22: #{tpu_custom_call.1} parent=1 // pred_check
      %p50 = pneg %p49
    $region23: #{tpu_custom_call.1} parent=1 // pred_check_branch
      %52 = sbr.rel (%p50) target = $region25
    $region24: #{tpu_custom_call.1} parent=1 // pred_region
      %v53 = vlaneseq
      %v54 = vshrl.u32 %v53, 7
      %v55 = vld [vmem:[%s2] sm:$0x1]
      %s56 = smul.u32 0, 8
      %v57 = vstv %s56
      %v58 = vsub.s32 %v55, %v57
      %v59 = vlaneseq
      %v60 = vshrl.u32 %v59, 7
      %v61 = vsub.s32 0, %v60
      %v62 = vrot.slane %v58, %v61
      %vm63 = vcmp.eq.s32.totalorder %v54, %v62
      %v64 = vsel %vm63, 1, 0
      %v65 = vcvt.s32.f32 %v64
      %v66 = vld [vmem:[#allocation8] sm:$0xff]
      %v67 = vld [vmem:[#allocation5] sm:$0xff]
      %v68 = vld [vmem:[#allocation5 + $0x8] sm:$0xff]
      %v69 = vld [vmem:[#allocation5 + $0x10] sm:$0xff]
      %v70 = vld [vmem:[#allocation5 + $0x18] sm:$0xff]
      %v71 = vld [vmem:[#allocation5 + $0x20] sm:$0xff]
      %v72 = vld [vmem:[#allocation5 + $0x28] sm:$0xff]
      %v73 = vld [vmem:[#allocation5 + $0x30] sm:$0xff]
      %v74 = vld [vmem:[#allocation5 + $0x38] sm:$0xff]
      %v75 = vld [vmem:[#allocation5 + $0x40] sm:$0xff]
      %v76 = vld [vmem:[#allocation5 + $0x48] sm:$0xff]
      %v77 = vld [vmem:[#allocation5 + $0x50] sm:$0xff]
      %v78 = vld [vmem:[#allocation5 + $0x58] sm:$0xff]
      %v79 = vld [vmem:[#allocation5 + $0x60] sm:$0xff]
      %v80 = vld [vmem:[#allocation5 + $0x68] sm:$0xff]
      %v81 = vld [vmem:[#allocation5 + $0x70] sm:$0xff]
      %v82 = vld [vmem:[#allocation5 + $0x78] sm:$0xff]
      %83 = vmatprep.subr.mxu0 0.0
      %84 = vmatpush1.msra.mxu0 %v67
      %85 = vmatprep.subr.mxu0 0.0
      %86 = vmatpush1.msra.mxu0 %v68
      %87 = vmatprep.subr.mxu0 0.0
      %88 = vmatpush1.msra.mxu0 %v69
      %89 = vmatprep.subr.mxu0 0.0
      %90 = vmatpush1.msra.mxu0 %v70
      %91 = vmatprep.subr.mxu0 0.0
      %92 = vmatpush1.msra.mxu0 %v71
      %93 = vmatprep.subr.mxu0 0.0
      %94 = vmatpush1.msra.mxu0 %v72
      %95 = vmatprep.subr.mxu0 0.0
      %96 = vmatpush1.msra.mxu0 %v73
      %97 = vmatprep.subr.mxu0 0.0
      %98 = vmatpush1.msra.mxu0 %v74
      %99 = vmatprep.subr.mxu0 0.0
      %100 = vmatpush1.msra.mxu0 %v75
      %101 = vmatprep.subr.mxu0 0.0
      %102 = vmatpush1.msra.mxu0 %v76
      %103 = vmatprep.subr.mxu0 0.0
      %104 = vmatpush1.msra.mxu0 %v77
      %105 = vmatprep.subr.mxu0 0.0
      %106 = vmatpush1.msra.mxu0 %v78
      %107 = vmatprep.subr.mxu0 0.0
      %108 = vmatpush1.msra.mxu0 %v79
      %109 = vmatprep.subr.mxu0 0.0
      %110 = vmatpush1.msra.mxu0 %v80
      %111 = vmatprep.subr.mxu0 0.0
      %112 = vmatpush1.msra.mxu0 %v81
      %113 = vmatprep.subr.mxu0 0.0
      %114 = vmatpush1.msra.mxu0 %v82
      %115 = vmatprep.subr.mxu0 0.0
      %116 = vmatpush1.msra.mxu0 0.0
      %117 = vmatprep.subr.mxu0 0.0
      %118 = vmatpush1.msra.mxu0 0.0
      %119 = vmatprep.subr.mxu0 0.0
      %120 = vmatpush1.msra.mxu0 0.0
      %121 = vmatprep.subr.mxu0 0.0
      %122 = vmatpush1.msra.mxu0 0.0
      %123 = vmatprep.subr.mxu0 0.0
      %124 = vmatpush1.msra.mxu0 0.0
      %125 = vmatprep.subr.mxu0 0.0
      %126 = vmatpush1.msra.mxu0 0.0
      %127 = vmatprep.subr.mxu0 0.0
      %128 = vmatpush1.msra.mxu0 0.0
      %129 = vmatprep.subr.mxu0 0.0
      %130 = vmatpush1.msra.mxu0 0.0
      %131 = vmatprep.subr.mxu0 0.0
      %132 = vmatpush1.msra.mxu0 0.0
      %133 = vmatprep.subr.mxu0 0.0
      %134 = vmatpush1.msra.mxu0 0.0
      %135 = vmatprep.subr.mxu0 0.0
      %136 = vmatpush1.msra.mxu0 0.0
      %137 = vmatprep.subr.mxu0 0.0
      %138 = vmatpush1.msra.mxu0 0.0
      %139 = vmatprep.subr.mxu0 0.0
      %140 = vmatpush1.msra.mxu0 0.0
      %141 = vmatprep.subr.mxu0 0.0
      %142 = vmatpush1.msra.mxu0 0.0
      %143 = vmatprep.subr.mxu0 0.0
      %144 = vmatpush1.msra.mxu0 0.0
      %145 = vmatprep.subr.mxu0 0.0
      %146 = vmatpush1.msra.mxu0 0.0
      %147 = vmatprep.mubr.f32.mxu0 0.0
      %148 = vmatmul.mubr.f32.gmra.mrb[0].mxu0 %v65
      %v149 = vpop.f32.mrb[0].mxu0
      %v150 = vadd.f32 0.0, %v149
      %v151 = vpop.f32.mrb[0].mxu0
      %152 = vdwg.mxu0
      %v153 = vadd.f32 %v66, %v150
      %154 = vst [vmem:[#allocation8] sm:$0xff] %v153
    $region25: #{tpu_custom_call.1} parent=1 // pred_fallthru
      _
    // Predicated region
    $region26: #{tpu_custom_call.1} parent=1 // pred_check
      _
    $region27: #{tpu_custom_call.1} parent=1 // pred_check_branch
      %156 = sbr.rel (0) target = $region29
    $region28: #{tpu_custom_call.1} parent=1 // pred_region
      %s158 = ssub.s32 128, 128
      %159 = vsyncadd [#allocation7], %s158
      %s161 = sshll.u32 [#allocation8], 4
      %s162 = int_to_ptr.vmem [resolvable:$true] %s161
      %164 = dma.vmem_to_hbm [thread:$0]  %s162, 128, %s5, [#allocation7]
    $region29: #{tpu_custom_call.1} parent=1 // pred_fallthru
      _
    // Predicated region
    $region30: #{tpu_custom_call.1} parent=1 // pred_check
      _
    $region31: #{tpu_custom_call.1} parent=1 // pred_check_branch
      %166 = sbr.rel (0) target = $region33
    $region32: #{tpu_custom_call.1} parent=1 // pred_region
      %167 = dma.done [#allocation7], 128
    $region33: #{tpu_custom_call.1} parent=1 // pred_fallthru
      _
    %168 = vsyncpa [#allocation6], 1
    %169 = vsyncpa [#allocation7], 1

</llo_original>
